<compile_context>
chip_gen: v5e
topology: v5e:2x2
jax: 0.10.0
libtpu: 0.0.40
codegen_flags: <defaults>
</compile_context>

<pallas_src>
import jax
import jax.numpy as jnp
from jax.experimental import pallas as pl
from jax.experimental.pallas import tpu as pltpu

# ---- model hyper-params (small, consistent with the module's __init__) ----
IN_CHANNELS = 16
HIDDEN_CHANNELS = 32
OUT_CHANNELS = 8
HIDDEN_LAYERS = 2
DROPOUT = 0.1          # identity in eval mode
N = 16                 # number of candidate links (batch)

MAX_TILE_N = 256       # row-tile size used once N grows past a single tile


def linkpred_kernel(xi_ref, xj_ref, w_in_ref, w_stack_ref, b_stack_ref, o_ref):
    C = IN_CHANNELS
    b = b_stack_ref[...]                     # (L+2, H) — load bias slab once

    # Input linear on concatenated features: cat(x_i, x_j) @ W_in + b_in,
    # computed as x_i @ W_in[:C] + x_j @ W_in[C:] (static, sublane-aligned ref slices).
    x = (jnp.dot(xi_ref[...], w_in_ref[:C, :], preferred_element_type=jnp.float32)
         + jnp.dot(xj_ref[...], w_in_ref[C:, :], preferred_element_type=jnp.float32)
         + b[0:1, :])

    # Hidden stack: Linear -> ReLU -> Dropout (identity in eval mode).
    for l in range(HIDDEN_LAYERS):
        x = jnp.dot(x, w_stack_ref[l], preferred_element_type=jnp.float32) + b[l + 1:l + 2, :]
        x = jnp.maximum(x, 0.0)

    # Output linear: W_out lives (zero-padded to H output columns) in the last slab slot.
    y = (jnp.dot(x, w_stack_ref[HIDDEN_LAYERS], preferred_element_type=jnp.float32)
         + b[HIDDEN_LAYERS + 1:HIDDEN_LAYERS + 2, :])
    o_ref[...] = y[:, :OUT_CHANNELS].astype(o_ref.dtype)


def pack_params(params):
    """One-time packing of the 6 PyTorch-style parameter arrays into 3 kernel operands."""
    w_in, b_in, hw, hb, w_out, b_out = params
    H = HIDDEN_CHANNELS
    # hidden weights + zero-padded output weight -> (L+1, H, H)
    w_out_pad = jnp.zeros((1, H, H), jnp.float32).at[0, :, :OUT_CHANNELS].set(w_out)
    w_stack = jnp.concatenate([hw, w_out_pad], axis=0)
    # all biases -> (L+2, H): [b_in, hb_0..hb_{L-1}, b_out (zero-padded)]
    b_out_pad = jnp.zeros((1, H), jnp.float32).at[:, :OUT_CHANNELS].set(b_out)
    b_stack = jnp.concatenate([b_in, hb.reshape(HIDDEN_LAYERS, H), b_out_pad], axis=0)
    return w_in, w_stack, b_stack


def link_predictor_forward(x_i, x_j, packed_params):
    w_in, w_stack, b_stack = packed_params
    n = x_i.shape[0]
    c = x_i.shape[1]

    # Row tile: whole batch if it fits in one tile (single grid step, zero pipeline
    # overhead at demo sizes), otherwise stream MAX_TILE_N-row tiles (multiple of 8).
    tile_n = n if n <= MAX_TILE_N else MAX_TILE_N
    grid = (pl.cdiv(n, tile_n),)

    row_spec = lambda shape_last: pl.BlockSpec((tile_n, shape_last), lambda i: (i, 0))
    # Weights/biases: constant index_map -> block stays resident in VMEM across steps.
    w_in_spec = pl.BlockSpec(w_in.shape, lambda i: (0, 0))
    w_stack_spec = pl.BlockSpec(w_stack.shape, lambda i: (0, 0, 0))
    b_stack_spec = pl.BlockSpec(b_stack.shape, lambda i: (0, 0))

    return pl.pallas_call(
        linkpred_kernel,
        out_shape=jax.ShapeDtypeStruct((n, OUT_CHANNELS), jnp.float32),
        grid=grid,
        in_specs=[row_spec(c), row_spec(c), w_in_spec, w_stack_spec, b_stack_spec],
        out_specs=row_spec(OUT_CHANNELS),
        compiler_params=pltpu.CompilerParams(dimension_semantics=("parallel",)),
    )(x_i, x_j, w_in, w_stack, b_stack)


def init_params(key):
    ks = jax.random.split(key, 6)
    scale = 0.1
    w_in = scale * jax.random.normal(ks[0], (2 * IN_CHANNELS, HIDDEN_CHANNELS), jnp.float32)
    b_in = scale * jax.random.normal(ks[1], (1, HIDDEN_CHANNELS), jnp.float32)
    hw = scale * jax.random.normal(ks[2], (HIDDEN_LAYERS, HIDDEN_CHANNELS, HIDDEN_CHANNELS), jnp.float32)
    hb = scale * jax.random.normal(ks[3], (HIDDEN_LAYERS, 1, HIDDEN_CHANNELS), jnp.float32)
    w_out = scale * jax.random.normal(ks[4], (HIDDEN_CHANNELS, OUT_CHANNELS), jnp.float32)
    b_out = scale * jax.random.normal(ks[5], (1, OUT_CHANNELS), jnp.float32)
    return (w_in, b_in, hw, hb, w_out, b_out)


def reference_forward(x_i, x_j, params):
    w_in, b_in, hw, hb, w_out, b_out = params
    x = jnp.concatenate([x_i, x_j], axis=1) @ w_in + b_in
    for l in range(HIDDEN_LAYERS):
        x = x @ hw[l] + hb[l]
        x = jnp.maximum(x, 0.0)
    return x @ w_out + b_out


if __name__ == "__main__":
    key = jax.random.PRNGKey(0)
    k_xi, k_xj, k_p = jax.random.split(key, 3)
    x_i = jax.random.normal(k_xi, (N, IN_CHANNELS), jnp.float32)
    x_j = jax.random.normal(k_xj, (N, IN_CHANNELS), jnp.float32)
    params = init_params(k_p)
    packed = jax.tree_util.tree_map(jax.block_until_ready, pack_params(params))  # pack once

    out = link_predictor_forward(x_i, x_j, packed)
    out = jax.block_until_ready(out)

    ref = reference_forward(x_i, x_j, params)
    assert out.shape == (N, OUT_CHANNELS)
    assert jnp.allclose(out, ref, atol=1e-5, rtol=1e-5), "mismatch vs reference"
    print("KERNEL_OK")
</pallas_src>

<mosaic_0001>
module attributes {stable_mosaic.version = 11 : i64} {
  func.func @linkpred_kernel(%arg0: i32, %arg1: memref<16x16xf32, #tpu.memory_space<vmem>>, %arg2: memref<16x16xf32, #tpu.memory_space<vmem>>, %arg3: memref<32x32xf32, #tpu.memory_space<vmem>>, %arg4: memref<3x32x32xf32, #tpu.memory_space<vmem>>, %arg5: memref<4x32xf32, #tpu.memory_space<vmem>>, %arg6: memref<16x8xf32, #tpu.memory_space<vmem>>) attributes {dimension_semantics = [#tpu.dimension_semantics<parallel>], iteration_bounds = array<i64: 1>, scalar_prefetch = 0 : i64, scratch_operands = 0 : i64, tpu.core_type = #tpu.core_type<tc>, window_params = [{transform_indices = @transform_0, window_bounds = array<i64: 16, 16>}, {transform_indices = @transform_1, window_bounds = array<i64: 16, 16>}, {pipeline_mode = #tpu.pipeline_mode<synchronous>, transform_indices = @transform_2, window_bounds = array<i64: 32, 32>}, {pipeline_mode = #tpu.pipeline_mode<synchronous>, transform_indices = @transform_3, window_bounds = array<i64: 3, 32, 32>}, {pipeline_mode = #tpu.pipeline_mode<synchronous>, transform_indices = @transform_4, window_bounds = array<i64: 4, 32>}, {transform_indices = @transform_5, window_bounds = array<i64: 16, 8>}]} {
    %c0 = arith.constant 0 : index
    %c0_0 = arith.constant 0 : index
    %0 = vector.load %arg5[%c0, %c0_0] : memref<4x32xf32, #tpu.memory_space<vmem>>, vector<4x32xf32>
    %c0_1 = arith.constant 0 : index
    %c0_2 = arith.constant 0 : index
    %1 = vector.load %arg1[%c0_1, %c0_2] : memref<16x16xf32, #tpu.memory_space<vmem>>, vector<16x16xf32>
    %c0_3 = arith.constant 0 : index
    %c0_4 = arith.constant 0 : index
    %2 = vector.load %arg3[%c0_3, %c0_4] : memref<32x32xf32, #tpu.memory_space<vmem>>, vector<16x32xf32>
    %cst = arith.constant dense<0.000000e+00> : vector<16x32xf32>
    %3 = tpu.matmul %1, %2, %cst {dimension_numbers = #tpu.dot_dimension_numbers<[1], [0], [0], [1], [0, 0, 1, 1], [], []>} : vector<16x16xf32>, vector<16x32xf32>, vector<16x32xf32> -> vector<16x32xf32>
    %c0_5 = arith.constant 0 : index
    %c0_6 = arith.constant 0 : index
    %4 = vector.load %arg2[%c0_5, %c0_6] : memref<16x16xf32, #tpu.memory_space<vmem>>, vector<16x16xf32>
    %c16 = arith.constant 16 : index
    %c0_7 = arith.constant 0 : index
    %5 = vector.load %arg3[%c16, %c0_7] : memref<32x32xf32, #tpu.memory_space<vmem>>, vector<16x32xf32>
    %cst_8 = arith.constant dense<0.000000e+00> : vector<16x32xf32>
    %6 = tpu.matmul %4, %5, %cst_8 {dimension_numbers = #tpu.dot_dimension_numbers<[1], [0], [0], [1], [0, 0, 1, 1], [], []>} : vector<16x16xf32>, vector<16x32xf32>, vector<16x32xf32> -> vector<16x32xf32>
    %7 = arith.addf %3, %6 : vector<16x32xf32>
    %8 = vector.extract_strided_slice %0 {offsets = [0, 0], sizes = [1, 32], strides = [1, 1]} : vector<4x32xf32> to vector<1x32xf32>
    %9 = vector.broadcast %8 : vector<1x32xf32> to vector<16x32xf32>
    %10 = arith.addf %7, %9 : vector<16x32xf32>
    %c0_9 = arith.constant 0 : index
    %c0_10 = arith.constant 0 : index
    %c0_11 = arith.constant 0 : index
    %11 = vector.load %arg4[%c0_9, %c0_10, %c0_11] : memref<3x32x32xf32, #tpu.memory_space<vmem>>, vector<1x32x32xf32>
    %12 = vector.shape_cast %11 : vector<1x32x32xf32> to vector<32x32xf32>
    %cst_12 = arith.constant dense<0.000000e+00> : vector<16x32xf32>
    %13 = tpu.matmul %10, %12, %cst_12 {dimension_numbers = #tpu.dot_dimension_numbers<[1], [0], [0], [1], [0, 0, 1, 1], [], []>} : vector<16x32xf32>, vector<32x32xf32>, vector<16x32xf32> -> vector<16x32xf32>
    %14 = vector.extract_strided_slice %0 {offsets = [1, 0], sizes = [1, 32], strides = [1, 1]} : vector<4x32xf32> to vector<1x32xf32>
    %15 = vector.broadcast %14 : vector<1x32xf32> to vector<16x32xf32>
    %16 = arith.addf %13, %15 : vector<16x32xf32>
    %cst_13 = arith.constant 0.000000e+00 : f32
    %17 = vector.broadcast %cst_13 : f32 to vector<16x32xf32>
    %18 = arith.maximumf %16, %17 : vector<16x32xf32>
    %c1 = arith.constant 1 : index
    %c0_14 = arith.constant 0 : index
    %c0_15 = arith.constant 0 : index
    %19 = vector.load %arg4[%c1, %c0_14, %c0_15] : memref<3x32x32xf32, #tpu.memory_space<vmem>>, vector<1x32x32xf32>
    %20 = vector.shape_cast %19 : vector<1x32x32xf32> to vector<32x32xf32>
    %cst_16 = arith.constant dense<0.000000e+00> : vector<16x32xf32>
    %21 = tpu.matmul %18, %20, %cst_16 {dimension_numbers = #tpu.dot_dimension_numbers<[1], [0], [0], [1], [0, 0, 1, 1], [], []>} : vector<16x32xf32>, vector<32x32xf32>, vector<16x32xf32> -> vector<16x32xf32>
    %22 = vector.extract_strided_slice %0 {offsets = [2, 0], sizes = [1, 32], strides = [1, 1]} : vector<4x32xf32> to vector<1x32xf32>
    %23 = vector.broadcast %22 : vector<1x32xf32> to vector<16x32xf32>
    %24 = arith.addf %21, %23 : vector<16x32xf32>
    %cst_17 = arith.constant 0.000000e+00 : f32
    %25 = vector.broadcast %cst_17 : f32 to vector<16x32xf32>
    %26 = arith.maximumf %24, %25 : vector<16x32xf32>
    %c2 = arith.constant 2 : index
    %c0_18 = arith.constant 0 : index
    %c0_19 = arith.constant 0 : index
    %27 = vector.load %arg4[%c2, %c0_18, %c0_19] : memref<3x32x32xf32, #tpu.memory_space<vmem>>, vector<1x32x32xf32>
    %28 = vector.shape_cast %27 : vector<1x32x32xf32> to vector<32x32xf32>
    %cst_20 = arith.constant dense<0.000000e+00> : vector<16x32xf32>
    %29 = tpu.matmul %26, %28, %cst_20 {dimension_numbers = #tpu.dot_dimension_numbers<[1], [0], [0], [1], [0, 0, 1, 1], [], []>} : vector<16x32xf32>, vector<32x32xf32>, vector<16x32xf32> -> vector<16x32xf32>
    %30 = vector.extract_strided_slice %0 {offsets = [3, 0], sizes = [1, 32], strides = [1, 1]} : vector<4x32xf32> to vector<1x32xf32>
    %31 = vector.broadcast %30 : vector<1x32xf32> to vector<16x32xf32>
    %32 = arith.addf %29, %31 : vector<16x32xf32>
    %33 = vector.extract_strided_slice %32 {offsets = [0, 0], sizes = [16, 8], strides = [1, 1]} : vector<16x32xf32> to vector<16x8xf32>
    %c0_21 = arith.constant 0 : index
    %c0_22 = arith.constant 0 : index
    %34 = vector.load %arg6[%c0_21, %c0_22] : memref<16x8xf32, #tpu.memory_space<vmem>>, vector<16x8xf32>
    tpu.vector_store %arg6[%c0_21, %c0_22], %33 {strides = array<i32>} : memref<16x8xf32, #tpu.memory_space<vmem>>, vector<16x8xf32>,
    return
  }
  func.func @transform_0(%arg0: i32) -> (i32, i32) {
    %c0_i32 = arith.constant 0 : i32
    %c0_i32_0 = arith.constant 0 : i32
    return %arg0, %c0_i32 : i32, i32
  }
  func.func @transform_1(%arg0: i32) -> (i32, i32) {
    %c0_i32 = arith.constant 0 : i32
    %c0_i32_0 = arith.constant 0 : i32
    return %arg0, %c0_i32 : i32, i32
  }
  func.func @transform_2(%arg0: i32) -> (i32, i32) {
    %c0_i32 = arith.constant 0 : i32
    %c0_i32_0 = arith.constant 0 : i32
    %c0_i32_1 = arith.constant 0 : i32
    return %c0_i32, %c0_i32_0 : i32, i32
  }
  func.func @transform_3(%arg0: i32) -> (i32, i32, i32) {
    %c0_i32 = arith.constant 0 : i32
    %c0_i32_0 = arith.constant 0 : i32
    %c0_i32_1 = arith.constant 0 : i32
    %c0_i32_2 = arith.constant 0 : i32
    return %c0_i32, %c0_i32_0, %c0_i32_1 : i32, i32, i32
  }
  func.func @transform_4(%arg0: i32) -> (i32, i32) {
    %c0_i32 = arith.constant 0 : i32
    %c0_i32_0 = arith.constant 0 : i32
    %c0_i32_1 = arith.constant 0 : i32
    return %c0_i32, %c0_i32_0 : i32, i32
  }
  func.func @transform_5(%arg0: i32) -> (i32, i32) {
    %c0_i32 = arith.constant 0 : i32
    %c0_i32_0 = arith.constant 0 : i32
    return %arg0, %c0_i32 : i32, i32
  }
}

</mosaic_0001>

<llo_original>
// kernel: tpu_custom_call.1
$region0: #{tpu_custom_call.1}
  #allocation0 [shape = 'u32[]', space=smem, size = 0x4, offset = 0x4, fixed_abs, tag = 'smem constant byte address 0x4 - core index']
  #allocation1 [shape = 'u32[72,128]{1,0:T(1,128)}', space=vmem, size = 0x9000, scoped, tag = 'internal scratch']
  %s0 = inlined_call_operand.hbm [shape: f32[16,16], index: 0, kind: input, shape index: {}]
  %s1 = inlined_call_operand.hbm [shape: f32[16,16], index: 1, kind: input, shape index: {}]
  %s2 = inlined_call_operand.hbm [shape: f32[32,32], index: 2, kind: input, shape index: {}]
  %s3 = inlined_call_operand.hbm [shape: f32[3,32,32], index: 3, kind: input, shape index: {}]
  %s4 = inlined_call_operand.hbm [shape: f32[4,32], index: 4, kind: input, shape index: {}]
  %s5 = inlined_call_operand.vmem [shape: f32[16,8], index: 5, kind: output, shape index: {}]
  %s6 = sld [smem:[#allocation0]]
  $region50: #{tpu_custom_call.1} parent=0
    _
  %s8 = ssub.s32 1, %s6
  %s9 = scalar_select 0, %s8, %s6
  $region1: #{tpu_custom_call.1} parent=0
    #allocation2 [shape = 'u8[8192]{0}', space=vmem, size = 0x2000, scoped, tag = 'input window, operand 0, single buffered']
    #allocation3 [shape = 's32[1]{0}', space=sflag, size = 0x4, scoped, tag = 'scoped memory for tpu_custom_call.1']
    #allocation4 [shape = 'u8[8192]{0}', space=vmem, size = 0x2000, scoped, tag = 'input window, operand 1, single buffered']
    #allocation5 [shape = 's32[1]{0}', space=sflag, size = 0x4, scoped, tag = 'scoped memory for tpu_custom_call.1']
    #allocation6 [shape = 'u8[16384]{0}', space=vmem, size = 0x4000, scoped, tag = 'input window, operand 2, single buffered']
    #allocation7 [shape = 'u8[49152]{0}', space=vmem, size = 0xc000, scoped, tag = 'input window, operand 3, single buffered']
    #allocation8 [shape = 's32[1]{0}', space=sflag, size = 0x4, scoped, tag = 'scoped memory for tpu_custom_call.1']
    #allocation9 [shape = 'u8[2048]{0}', space=vmem, size = 0x800, scoped, tag = 'input window, operand 4, single buffered']
    %10 = vsyncpa [#allocation3], 0
    %11 = vsyncpa [#allocation5], 0
    %12 = vsyncpa [#allocation8], 0
    // Predicated region
    $region2: #{tpu_custom_call.1} parent=1 // pred_check
      _
    $region3: #{tpu_custom_call.1} parent=1 // pred_check_branch
      %14 = sbr.rel (0) target = $region5
    $region4: #{tpu_custom_call.1} parent=1 // pred_region
      %16 = vsyncadd [#allocation3], 0
      %s17 = sshll.u32 %s0, 4
      %s18 = int_to_ptr.hbm [resolvable:$true] %s17
      %s19 = sshll.u32 [#allocation2], 4
      %s20 = int_to_ptr.vmem [resolvable:$true] %s19
      %25 = dma.hbm_to_vmem [thread:$0]  %s18, 256, %s20, [#allocation3], 128, 128, 8
    $region5: #{tpu_custom_call.1} parent=1 // pred_fallthru
      _
    // Predicated region
    $region6: #{tpu_custom_call.1} parent=1 // pred_check
      _
    $region7: #{tpu_custom_call.1} parent=1 // pred_check_branch
      %27 = sbr.rel (0) target = $region9
    $region8: #{tpu_custom_call.1} parent=1 // pred_region
      %29 = vsyncadd [#allocation5], 0
      %s30 = sshll.u32 %s1, 4
      %s31 = int_to_ptr.hbm [resolvable:$true] %s30
      %s32 = sshll.u32 [#allocation4], 4
      %s33 = int_to_ptr.vmem [resolvable:$true] %s32
      %38 = dma.hbm_to_vmem [thread:$0]  %s31, 256, %s33, [#allocation5], 128, 128, 8
    $region9: #{tpu_custom_call.1} parent=1 // pred_fallthru
      _
    // Predicated region
    $region10: #{tpu_custom_call.1} parent=1 // pred_check
      _
    $region11: #{tpu_custom_call.1} parent=1 // pred_check_branch
      %40 = sbr.rel (0) target = $region13
    $region12: #{tpu_custom_call.1} parent=1 // pred_region
      %42 = vsyncadd [#allocation5], 0
      %s43 = sshll.u32 %s2, 4
      %s44 = int_to_ptr.hbm [resolvable:$true] %s43
      %s45 = sshll.u32 [#allocation6], 4
      %s46 = int_to_ptr.vmem [resolvable:$true] %s45
      %51 = dma.hbm_to_vmem [thread:$0]  %s44, 512, %s46, [#allocation5], 128, 128, 8
    $region13: #{tpu_custom_call.1} parent=1 // pred_fallthru
      _
    // Predicated region
    $region14: #{tpu_custom_call.1} parent=1 // pred_check
      _
    $region15: #{tpu_custom_call.1} parent=1 // pred_check_branch
      %53 = sbr.rel (0) target = $region17
    $region16: #{tpu_custom_call.1} parent=1 // pred_region
      %55 = vsyncadd [#allocation8], 0
      %s56 = sshll.u32 %s3, 4
      %s57 = int_to_ptr.hbm [resolvable:$true] %s56
      %s58 = sshll.u32 [#allocation7], 4
      %s59 = int_to_ptr.vmem [resolvable:$true] %s58
      %64 = dma.hbm_to_vmem [thread:$0]  %s57, 1536, %s59, [#allocation8], 128, 128, 8
    $region17: #{tpu_custom_call.1} parent=1 // pred_fallthru
      _
    // Predicated region
    $region18: #{tpu_custom_call.1} parent=1 // pred_check
      _
    $region19: #{tpu_custom_call.1} parent=1 // pred_check_branch
      %66 = sbr.rel (0) target = $region21
    $region20: #{tpu_custom_call.1} parent=1 // pred_region
      %68 = vsyncadd [#allocation8], 0
      %s70 = sshll.u32 %s4, 4
      %s71 = int_to_ptr.hbm [resolvable:$true] %s70
      %s72 = sshll.u32 [#allocation9], 4
      %s73 = int_to_ptr.vmem [resolvable:$true] %s72
      %75 = dma.hbm_to_vmem [thread:$0]  %s71, 64, %s73, [#allocation8]
    $region21: #{tpu_custom_call.1} parent=1 // pred_fallthru
      _
    // Predicated region
    $region22: #{tpu_custom_call.1} parent=1 // pred_check
      _
    $region23: #{tpu_custom_call.1} parent=1 // pred_check_branch
      %77 = sbr.rel (0) target = $region25
    $region24: #{tpu_custom_call.1} parent=1 // pred_region
      %79 = dma.done [#allocation3], 256
    $region25: #{tpu_custom_call.1} parent=1 // pred_fallthru
      _
    // Predicated region
    $region26: #{tpu_custom_call.1} parent=1 // pred_check
      _
    $region27: #{tpu_custom_call.1} parent=1 // pred_check_branch
      %81 = sbr.rel (0) target = $region29
    $region28: #{tpu_custom_call.1} parent=1 // pred_region
      %83 = dma.done [#allocation5], 256
    $region29: #{tpu_custom_call.1} parent=1 // pred_fallthru
      _
    // Predicated region
    $region30: #{tpu_custom_call.1} parent=1 // pred_check
      _
    $region31: #{tpu_custom_call.1} parent=1 // pred_check_branch
      %85 = sbr.rel (0) target = $region33
    $region32: #{tpu_custom_call.1} parent=1 // pred_region
      %87 = dma.done [#allocation5], 512
    $region33: #{tpu_custom_call.1} parent=1 // pred_fallthru
      _
    // Predicated region
    $region34: #{tpu_custom_call.1} parent=1 // pred_check
      _
    $region35: #{tpu_custom_call.1} parent=1 // pred_check_branch
      %89 = sbr.rel (0) target = $region37
    $region36: #{tpu_custom_call.1} parent=1 // pred_region
      %91 = dma.done [#allocation8], 1536
    $region37: #{tpu_custom_call.1} parent=1 // pred_fallthru
      _
    // Predicated region
    $region38: #{tpu_custom_call.1} parent=1 // pred_check
      _
    $region39: #{tpu_custom_call.1} parent=1 // pred_check_branch
      %93 = sbr.rel (0) target = $region41
    $region40: #{tpu_custom_call.1} parent=1 // pred_region
      %95 = dma.done [#allocation8], 64
    $region41: #{tpu_custom_call.1} parent=1 // pred_fallthru
      _
    %v96 = vld [vmem:[#allocation9] sm:$0xf]
    %v97 = vld [vmem:[#allocation2] sm:$0xff]
    %v98 = vld [vmem:[#allocation2 + $0x8] sm:$0xff]
    %v99 = vld [vmem:[#allocation6] sm:$0xff]
    %v100 = vld [vmem:[#allocation6 + $0x8] sm:$0xff]
    %v101 = vld [vmem:[#allocation4] sm:$0xff]
    %v102 = vld [vmem:[#allocation4 + $0x8] sm:$0xff]
    %v103 = vld [vmem:[#allocation6 + $0x10] sm:$0xff]
    %v104 = vld [vmem:[#allocation6 + $0x18] sm:$0xff]
    %vm105 = vcmask 130048
    %v107 = vsel %vm105, %v101, 0
    %v110 = vsel %vm105, %v102, 0
    %112 = vmatpush.msra.mxu0 0.0
    %113 = vmatpush.msra.mxu0 0.0
    %114 = vmatpush.msra.mxu0 0.0
    %115 = vmatpush.msra.mxu0 0.0
    %116 = vmatpush.msra.mxu0 0.0
    %117 = vmatpush.msra.mxu0 0.0
    %118 = vmatpush.msra.mxu0 0.0
    %119 = vmatpush.msra.mxu0 0.0
    %120 = vmatpush.msra.mxu0 0.0
    %121 = vmatpush.msra.mxu0 0.0
    %122 = vmatpush.msra.mxu0 0.0
    %123 = vmatpush.msra.mxu0 0.0
    %124 = vmatpush.msra.mxu0 0.0
    %125 = vmatpush.msra.mxu0 0.0
    %126 = vmatpush.msra.mxu0 %v104
    %127 = vmatpush.msra.mxu0 %v103
    %128 = vmatmul.f32.gmra.mxu0 %v107
    %v129 = vpop.f32.mrf.mxu0
    %v130 = vadd.f32 0.0, %v129
    %131 = vmatmul.f32.gmra.mxu0 %v110
    %v132 = vpop.f32.mrf.mxu0
    %v133 = vadd.f32 0.0, %v132
    %134 = vdwg.mxu0
    %v136 = vsel %vm105, %v97, 0
    %v139 = vsel %vm105, %v98, 0
    %141 = vmatpush.msra.mxu0 0.0
    %142 = vmatpush.msra.mxu0 0.0
    %143 = vmatpush.msra.mxu0 0.0
    %144 = vmatpush.msra.mxu0 0.0
    %145 = vmatpush.msra.mxu0 0.0
    %146 = vmatpush.msra.mxu0 0.0
    %147 = vmatpush.msra.mxu0 0.0
    %148 = vmatpush.msra.mxu0 0.0
    %149 = vmatpush.msra.mxu0 0.0
    %150 = vmatpush.msra.mxu0 0.0
    %151 = vmatpush.msra.mxu0 0.0
    %152 = vmatpush.msra.mxu0 0.0
    %153 = vmatpush.msra.mxu0 0.0
    %154 = vmatpush.msra.mxu0 0.0
    %155 = vmatpush.msra.mxu0 %v100
    %156 = vmatpush.msra.mxu0 %v99
    %157 = vmatmul.f32.gmra.mxu0 %v136
    %v158 = vpop.f32.mrf.mxu0
    %v159 = vadd.f32 %v130, %v158
    %160 = vmatmul.f32.gmra.mxu0 %v139
    %v161 = vpop.f32.mrf.mxu0
    %v162 = vadd.f32 %v133, %v161
    %163 = vdwg.mxu0
    %v164 = vperm.slane %v96, 0
    %v165 = vadd.f32 %v159, %v164
    %v166 = vadd.f32 %v162, %v164
    %v167 = vld [vmem:[#allocation7] sm:$0xff]
    %v168 = vld [vmem:[#allocation7 + $0x8] sm:$0xff]
    %v169 = vld [vmem:[#allocation7 + $0x10] sm:$0xff]
    %v170 = vld [vmem:[#allocation7 + $0x18] sm:$0xff]
    %v171 = vperm.slane %v96, 1
    %vm172 = vcmask 261120
    %v174 = vsel %vm172, %v165, 0
    %v177 = vsel %vm172, %v166, 0
    %179 = vmatpush.msra.mxu0 0.0
    %180 = vmatpush.msra.mxu0 0.0
    %181 = vmatpush.msra.mxu0 0.0
    %182 = vmatpush.msra.mxu0 0.0
    %183 = vmatpush.msra.mxu0 0.0
    %184 = vmatpush.msra.mxu0 0.0
    %185 = vmatpush.msra.mxu0 0.0
    %186 = vmatpush.msra.mxu0 0.0
    %187 = vmatpush.msra.mxu0 0.0
    %188 = vmatpush.msra.mxu0 0.0
    %189 = vmatpush.msra.mxu0 0.0
    %190 = vmatpush.msra.mxu0 0.0
    %191 = vmatpush.msra.mxu0 %v170
    %192 = vmatpush.msra.mxu0 %v169
    %193 = vmatpush.msra.mxu0 %v168
    %194 = vmatpush.msra.mxu0 %v167
    %195 = vmatmul.f32.gmra.mxu0 %v174
    %v196 = vpop.f32.mrf.mxu0
    %v197 = vadd.f32 %v171, %v196
    %198 = vmatmul.f32.gmra.mxu0 %v177
    %v199 = vpop.f32.mrf.mxu0
    %v200 = vadd.f32 %v171, %v199
    %201 = vdwg.mxu0
    %v202 = vmax.f32 %v197, 0.0
    %v203 = vmax.f32 %v200, 0.0
    %s204 = scalar_lea.vmem [#allocation7], 32
    %v205 = vld [vmem:[%s204] sm:$0xff]
    %v206 = vld [vmem:[%s204 + $0x8] sm:$0xff]
    %v207 = vld [vmem:[%s204 + $0x10] sm:$0xff]
    %v208 = vld [vmem:[%s204 + $0x18] sm:$0xff]
    %v209 = vperm.slane %v96, 2
    %v211 = vsel %vm172, %v202, 0
    %v214 = vsel %vm172, %v203, 0
    %216 = vmatpush.msra.mxu0 0.0
    %217 = vmatpush.msra.mxu0 0.0
    %218 = vmatpush.msra.mxu0 0.0
    %219 = vmatpush.msra.mxu0 0.0
    %220 = vmatpush.msra.mxu0 0.0
    %221 = vmatpush.msra.mxu0 0.0
    %222 = vmatpush.msra.mxu0 0.0
    %223 = vmatpush.msra.mxu0 0.0
    %224 = vmatpush.msra.mxu0 0.0
    %225 = vmatpush.msra.mxu0 0.0
    %226 = vmatpush.msra.mxu0 0.0
    %227 = vmatpush.msra.mxu0 0.0
    %228 = vmatpush.msra.mxu0 %v208
    %229 = vmatpush.msra.mxu0 %v207
    %230 = vmatpush.msra.mxu0 %v206
    %231 = vmatpush.msra.mxu0 %v205
    %232 = vmatmul.f32.gmra.mxu0 %v211
    %v233 = vpop.f32.mrf.mxu0
    %v234 = vadd.f32 %v209, %v233
    %235 = vmatmul.f32.gmra.mxu0 %v214
    %v236 = vpop.f32.mrf.mxu0
    %v237 = vadd.f32 %v209, %v236
    %238 = vdwg.mxu0
    %v239 = vmax.f32 %v234, 0.0
    %v240 = vmax.f32 %v237, 0.0
    %s241 = scalar_lea.vmem [#allocation7], 64
    %v242 = vld [vmem:[%s241] sm:$0xff]
    %v243 = vld [vmem:[%s241 + $0x8] sm:$0xff]
    %v244 = vld [vmem:[%s241 + $0x10] sm:$0xff]
    %v245 = vld [vmem:[%s241 + $0x18] sm:$0xff]
    %v246 = vperm.slane %v96, 3
    %v248 = vsel %vm172, %v239, 0
    %v251 = vsel %vm172, %v240, 0
    %253 = vmatpush.msra.mxu0 0.0
    %254 = vmatpush.msra.mxu0 0.0
    %255 = vmatpush.msra.mxu0 0.0
    %256 = vmatpush.msra.mxu0 0.0
    %257 = vmatpush.msra.mxu0 0.0
    %258 = vmatpush.msra.mxu0 0.0
    %259 = vmatpush.msra.mxu0 0.0
    %260 = vmatpush.msra.mxu0 0.0
    %261 = vmatpush.msra.mxu0 0.0
    %262 = vmatpush.msra.mxu0 0.0
    %263 = vmatpush.msra.mxu0 0.0
    %264 = vmatpush.msra.mxu0 0.0
    %265 = vmatpush.msra.mxu0 %v245
    %266 = vmatpush.msra.mxu0 %v244
    %267 = vmatpush.msra.mxu0 %v243
    %268 = vmatpush.msra.mxu0 %v242
    %269 = vmatmul.f32.gmra.mxu0 %v248
    %v270 = vpop.f32.mrf.mxu0
    %v271 = vadd.f32 %v246, %v270
    %272 = vmatmul.f32.gmra.mxu0 %v251
    %v273 = vpop.f32.mrf.mxu0
    %v274 = vadd.f32 %v246, %v273
    %275 = vdwg.mxu0
    %vm276 = vcmask 64512
    %277 = vst.msk [vmem:[%s5] sm:$0xff] %vm276, %v271
    %278 = vst.msk [vmem:[%s5 + $0x8] sm:$0xff] %vm276, %v274
    // Predicated region
    $region42: #{tpu_custom_call.1} parent=1 // pred_check
      _
    $region43: #{tpu_custom_call.1} parent=1 // pred_check_branch
      %280 = sbr.rel (0) target = $region45
    $region44: #{tpu_custom_call.1} parent=1 // pred_region
      _
    $region45: #{tpu_custom_call.1} parent=1 // pred_fallthru
      _
    // Predicated region
    $region46: #{tpu_custom_call.1} parent=1 // pred_check
      _
    $region47: #{tpu_custom_call.1} parent=1 // pred_check_branch
      %282 = sbr.rel (0) target = $region49
    $region48: #{tpu_custom_call.1} parent=1 // pred_region
      _
    $region49: #{tpu_custom_call.1} parent=1 // pred_fallthru
      _
    %283 = vsyncpa [#allocation3], 1
    %284 = vsyncpa [#allocation5], 1
    %285 = vsyncpa [#allocation8], 1

</llo_original>
